<compile_context>
chip_gen: v7x
topology: tpu7x:2x2x1
jax: 0.10.0
libtpu: 0.0.40
codegen_flags: <defaults>
</compile_context>

<pallas_src>
import jax
import jax.numpy as jnp
from jax.experimental import pallas as pl
from jax.experimental.pallas import tpu as pltpu

_LANES = 128  # output lane padding width


def mlp_kernel(x_ref, w1_ref, b1_ref, w2_ref, b2_ref, o_ref):
    # hidden = sigmoid(x @ W1 + b1): bf16 MXU matmul, f32 accumulate,
    # f32 bias-add + sigmoid on VPU/EUP.
    h = jnp.dot(x_ref[...], w1_ref[...], preferred_element_type=jnp.float32)
    h = jax.nn.sigmoid(h + b1_ref[...])                      # (TB, H) + (1, H)
    # logits = h @ W2_pad + b2; W2_pad is (H, 128) with the real weights in
    # column 0, so the store below is lane-dense. b2 is a scalar from SMEM.
    logits = jnp.dot(h.astype(jnp.bfloat16), w2_ref[...],
                     preferred_element_type=jnp.float32)
    o_ref[...] = jax.nn.sigmoid(logits + b2_ref[0, 0]).astype(o_ref.dtype)


def _round_up(a, m):
    return (a + m - 1) // m * m


def mlp_forward(x, w1, b1, w2, b2):
    """x: (B, in_dim) f32; w1: (in_dim, H); b1: (H,) or (1,H); w2: (H,1); b2: (1,1)."""
    B, in_dim = x.shape
    hidden = w1.shape[1]

    # --- host-side layout / dtype plumbing (not compute hoisting) ---
    x_bf = x.astype(jnp.bfloat16)
    w1_bf = w1.astype(jnp.bfloat16)
    b1_row = jnp.asarray(b1, jnp.float32).reshape(1, hidden)
    w2_pad = jnp.pad(jnp.asarray(w2, jnp.float32).astype(jnp.bfloat16).reshape(hidden, 1),
                     ((0, 0), (0, _LANES - 1)))
    b2_s = jnp.asarray(b2, jnp.float32).reshape(1, 1)

    # Batch tiling: large tiles amortize per-step overhead; 512 rows keeps the
    # working set (2x double-buffered bf16 x tile + resident weights + 2x f32
    # output tile) comfortably inside v7x's 64 MiB VMEM.
    TB = 512 if B >= 512 else _round_up(B, 8)
    B_pad = _round_up(B, TB)
    if B_pad != B:
        x_bf = jnp.pad(x_bf, ((0, B_pad - B), (0, 0)))

    grid = (B_pad // TB,)

    cost = pl.CostEstimate(
        flops=2 * B_pad * in_dim * hidden + 2 * B_pad * hidden * _LANES,
        transcendentals=B_pad * (hidden + _LANES),
        bytes_accessed=(x_bf.size * 2 + w1_bf.size * 2 + w2_pad.size * 2
                        + b1_row.size * 4 + B_pad * _LANES * 4),
    )

    out_padded = pl.pallas_call(
        mlp_kernel,
        out_shape=jax.ShapeDtypeStruct((B_pad, _LANES), jnp.float32),
        grid=grid,
        in_specs=[
            pl.BlockSpec((TB, in_dim), lambda i: (i, 0)),        # x: tiled over batch
            pl.BlockSpec((in_dim, hidden), lambda i: (0, 0)),    # W1: VMEM-resident
            pl.BlockSpec((1, hidden), lambda i: (0, 0)),         # b1: VMEM-resident
            pl.BlockSpec((hidden, _LANES), lambda i: (0, 0)),    # W2 (lane-padded)
            pl.BlockSpec(memory_space=pltpu.MemorySpace.SMEM),   # b2 scalar in SMEM
        ],
        out_specs=pl.BlockSpec((TB, _LANES), lambda i: (i, 0)),
        compiler_params=pltpu.CompilerParams(
            dimension_semantics=("parallel",),
            vmem_limit_bytes=48 * 1024 * 1024,
        ),
        cost_estimate=cost,
    )(x_bf, w1_bf, b1_row, w2_pad, b2_s)

    # Column 0 of the lane-padded output holds the real classifier output.
    return out_padded[:B, :1]


def init_params(key, input_dim, hidden_dim):
    # Deterministic init mimicking nn.Linear's U(-1/sqrt(fan_in), 1/sqrt(fan_in)).
    k1, k2, k3, k4 = jax.random.split(key, 4)
    bound1 = 1.0 / jnp.sqrt(input_dim)
    bound2 = 1.0 / jnp.sqrt(hidden_dim)
    # Stored already transposed: (in, hidden) and (hidden, 1).
    w1 = jax.random.uniform(k1, (input_dim, hidden_dim), jnp.float32, -bound1, bound1)
    b1 = jax.random.uniform(k2, (1, hidden_dim), jnp.float32, -bound1, bound1)
    w2 = jax.random.uniform(k3, (hidden_dim, 1), jnp.float32, -bound2, bound2)
    b2 = jax.random.uniform(k4, (1, 1), jnp.float32, -bound2, bound2)
    return w1, b1, w2, b2


def mlp_reference(x, w1, b1, w2, b2):
    h = jax.nn.sigmoid(x @ w1 + b1)
    return jax.nn.sigmoid(h @ w2 + b2)


if __name__ == "__main__":
    key = jax.random.PRNGKey(0)
    kx, kp = jax.random.split(key)

    B, INPUT_DIM, HIDDEN_DIM = 8, 32, 32
    x = jax.random.normal(kx, (B, INPUT_DIM), jnp.float32)
    w1, b1, w2, b2 = init_params(kp, INPUT_DIM, HIDDEN_DIM)

    out = mlp_forward(x, w1, b1, w2, b2)
    out = jax.block_until_ready(out)

    ref = mlp_reference(x, w1, b1, w2, b2)
    assert out.shape == (B, 1), out.shape
    # bf16 MXU inputs with f32 accumulation -> looser tolerance than pure f32.
    assert jnp.allclose(out, ref, atol=2e-2, rtol=2e-2), (out, ref)

    print("KERNEL_OK")
</pallas_src>

<mosaic_0001>
module attributes {stable_mosaic.version = 11 : i64} {
  func.func @mlp_kernel(%arg0: i32, %arg1: memref<8x32xbf16, #tpu.memory_space<vmem>>, %arg2: memref<32x32xbf16, #tpu.memory_space<vmem>>, %arg3: memref<1x32xf32, #tpu.memory_space<vmem>>, %arg4: memref<32x128xbf16, #tpu.memory_space<vmem>>, %arg5: memref<1x1xf32, #tpu.memory_space<smem>>, %arg6: memref<8x128xf32, #tpu.memory_space<vmem>>) attributes {dimension_semantics = [#tpu.dimension_semantics<parallel>], iteration_bounds = array<i64: 1>, scalar_prefetch = 0 : i64, scratch_operands = 0 : i64, tpu.core_type = #tpu.core_type<tc>, window_params = [{transform_indices = @transform_0, window_bounds = array<i64: 8, 32>}, {pipeline_mode = #tpu.pipeline_mode<synchronous>, transform_indices = @transform_1, window_bounds = array<i64: 32, 32>}, {pipeline_mode = #tpu.pipeline_mode<synchronous>, transform_indices = @transform_2, window_bounds = array<i64: 1, 32>}, {pipeline_mode = #tpu.pipeline_mode<synchronous>, transform_indices = @transform_3, window_bounds = array<i64: 32, 128>}, {transform_indices = @transform_4, window_bounds = array<i64: 1, 1>}, {transform_indices = @transform_5, window_bounds = array<i64: 8, 128>}]} {
    %c0 = arith.constant 0 : index
    %c0_0 = arith.constant 0 : index
    %0 = vector.load %arg1[%c0, %c0_0] : memref<8x32xbf16, #tpu.memory_space<vmem>>, vector<8x32xbf16>
    %c0_1 = arith.constant 0 : index
    %c0_2 = arith.constant 0 : index
    %1 = vector.load %arg2[%c0_1, %c0_2] : memref<32x32xbf16, #tpu.memory_space<vmem>>, vector<32x32xbf16>
    %cst = arith.constant dense<0.000000e+00> : vector<8x32xf32>
    %2 = tpu.matmul %0, %1, %cst {dimension_numbers = #tpu.dot_dimension_numbers<[1], [0], [0], [1], [0, 0, 1, 1], [], []>} : vector<8x32xbf16>, vector<32x32xbf16>, vector<8x32xf32> -> vector<8x32xf32>
    %c0_3 = arith.constant 0 : index
    %c0_4 = arith.constant 0 : index
    %3 = vector.load %arg3[%c0_3, %c0_4] : memref<1x32xf32, #tpu.memory_space<vmem>>, vector<1x32xf32>
    %4 = vector.broadcast %3 : vector<1x32xf32> to vector<8x32xf32>
    %5 = arith.addf %2, %4 : vector<8x32xf32>
    %6 = arith.negf %5 : vector<8x32xf32>
    %7 = math.exp %6 : vector<8x32xf32>
    %cst_5 = arith.constant 1.000000e+00 : f32
    %8 = vector.broadcast %cst_5 : f32 to vector<8x32xf32>
    %9 = arith.addf %8, %7 : vector<8x32xf32>
    %10 = arith.divf %8, %9 : vector<8x32xf32>
    %11 = arith.truncf %10 : vector<8x32xf32> to vector<8x32xbf16>
    %c0_6 = arith.constant 0 : index
    %c0_7 = arith.constant 0 : index
    %12 = vector.load %arg4[%c0_6, %c0_7] : memref<32x128xbf16, #tpu.memory_space<vmem>>, vector<32x128xbf16>
    %cst_8 = arith.constant dense<0.000000e+00> : vector<8x128xf32>
    %13 = tpu.matmul %11, %12, %cst_8 {dimension_numbers = #tpu.dot_dimension_numbers<[1], [0], [0], [1], [0, 0, 1, 1], [], []>} : vector<8x32xbf16>, vector<32x128xbf16>, vector<8x128xf32> -> vector<8x128xf32>
    %c0_9 = arith.constant 0 : index
    %c0_10 = arith.constant 0 : index
    %14 = memref.load %arg5[%c0_9, %c0_10] : memref<1x1xf32, #tpu.memory_space<smem>>
    %15 = vector.broadcast %14 : f32 to vector<8x128xf32>
    %16 = arith.addf %13, %15 : vector<8x128xf32>
    %17 = arith.negf %16 : vector<8x128xf32>
    %18 = math.exp %17 : vector<8x128xf32>
    %cst_11 = arith.constant 1.000000e+00 : f32
    %19 = vector.broadcast %cst_11 : f32 to vector<8x128xf32>
    %20 = arith.addf %19, %18 : vector<8x128xf32>
    %21 = arith.divf %19, %20 : vector<8x128xf32>
    %c0_12 = arith.constant 0 : index
    %c0_13 = arith.constant 0 : index
    %22 = vector.load %arg6[%c0_12, %c0_13] : memref<8x128xf32, #tpu.memory_space<vmem>>, vector<8x128xf32>
    tpu.vector_store %arg6[%c0_12, %c0_13], %21 {strides = array<i32>} : memref<8x128xf32, #tpu.memory_space<vmem>>, vector<8x128xf32>,
    return
  }
  func.func @transform_0(%arg0: i32) -> (i32, i32) {
    %c0_i32 = arith.constant 0 : i32
    %c0_i32_0 = arith.constant 0 : i32
    return %arg0, %c0_i32 : i32, i32
  }
  func.func @transform_1(%arg0: i32) -> (i32, i32) {
    %c0_i32 = arith.constant 0 : i32
    %c0_i32_0 = arith.constant 0 : i32
    %c0_i32_1 = arith.constant 0 : i32
    return %c0_i32, %c0_i32_0 : i32, i32
  }
  func.func @transform_2(%arg0: i32) -> (i32, i32) {
    %c0_i32 = arith.constant 0 : i32
    %c0_i32_0 = arith.constant 0 : i32
    %c0_i32_1 = arith.constant 0 : i32
    return %c0_i32, %c0_i32_0 : i32, i32
  }
  func.func @transform_3(%arg0: i32) -> (i32, i32) {
    %c0_i32 = arith.constant 0 : i32
    %c0_i32_0 = arith.constant 0 : i32
    %c0_i32_1 = arith.constant 0 : i32
    return %c0_i32, %c0_i32_0 : i32, i32
  }
  func.func @transform_4(%arg0: i32) -> (i32, i32) {
    %c0_i32 = arith.constant 0 : i32
    %c0_i32_0 = arith.constant 0 : i32
    %c0_i32_1 = arith.constant 0 : i32
    return %c0_i32, %c0_i32_0 : i32, i32
  }
  func.func @transform_5(%arg0: i32) -> (i32, i32) {
    %c0_i32 = arith.constant 0 : i32
    %c0_i32_0 = arith.constant 0 : i32
    return %arg0, %c0_i32 : i32, i32
  }
}

</mosaic_0001>

<llo_original>
// kernel: tpu_custom_call.1
$region0: #{tpu_custom_call.1}
  #allocation0 [shape = 'u32[]', space=smem, size = 0x4, offset = 0x4, fixed_abs, tag = 'smem constant byte address 0x4 - core index']
  #allocation1 [shape = 'u32[144,128]{1,0:T(1,128)}', space=vmem, size = 0x12000, scoped, tag = 'internal scratch']
  #allocation2 [shape = 'f32[1,1]{1,0:T(1,128)S(6)}', space=smem, size = 0x200, scoped, tag = 'scoped memory for tpu_custom_call.1']
  %s0 = inlined_call_operand.hbm [shape: bf16[8,32], index: 0, kind: input, shape index: {}]
  %s1 = inlined_call_operand.hbm [shape: bf16[32,32], index: 1, kind: input, shape index: {}]
  %s2 = inlined_call_operand.vmem [shape: f32[1,32], index: 2, kind: input, shape index: {}]
  %s3 = inlined_call_operand.hbm [shape: bf16[32,128], index: 3, kind: input, shape index: {}]
  %s4 = inlined_call_operand.<no memory space> [shape: f32[1,1], index: 4, kind: input, shape index: {}]
  %s5 = inlined_call_operand.hbm [shape: f32[8,128], index: 5, kind: output, shape index: {}]
  %s6 = sld [smem:[#allocation0]]
  $region42: #{tpu_custom_call.1} parent=0
    _
  %s8 = ssub.s32 1, %s6
  %s9 = scalar_select 0, %s8, %s6
  %10 = sst [smem:[#allocation2]] %s4
  $region1: #{tpu_custom_call.1} parent=0
    #allocation3 [shape = 'u8[2048]{0}', space=vmem, size = 0x800, scoped, tag = 'input window, operand 0, single buffered']
    #allocation4 [shape = 's32[1]{0}', space=sflag, size = 0x4, scoped, tag = 'scoped memory for tpu_custom_call.1']
    #allocation5 [shape = 's32[1]{0}', space=sflag, size = 0x4, scoped, tag = 'scoped memory for tpu_custom_call.1']
    #allocation6 [shape = 'u8[8192]{0}', space=vmem, size = 0x2000, scoped, tag = 'input window, operand 1, single buffered']
    #allocation7 [shape = 's32[1]{0}', space=sflag, size = 0x4, scoped, tag = 'scoped memory for tpu_custom_call.1']
    #allocation8 [shape = 'u8[8192]{0}', space=vmem, size = 0x2000, scoped, tag = 'input window, operand 3, single buffered']
    #allocation9 [shape = 'u8[4096]{0}', space=vmem, size = 0x1000, scoped, tag = 'output window, operand 0, single buffered']
    %11 = vsyncpa [#allocation4], 0
    %12 = vsyncpa [#allocation7], 0
    %13 = vsyncpa [#allocation5], 0
    // Predicated region
    $region2: #{tpu_custom_call.1} parent=1 // pred_check
      _
    $region3: #{tpu_custom_call.1} parent=1 // pred_check_branch
      %15 = sbr.rel (0) target = $region5
    $region4: #{tpu_custom_call.1} parent=1 // pred_region
      %s17 = ssub.s32 64, 64
      %18 = vsyncadd [#allocation4], %s17
      %s20 = sshll.u32 [#allocation3], 4
      %s21 = int_to_ptr.vmem [resolvable:$true] %s20
      %23 = dma.hbm_to_vmem [thread:$0]  %s0, 64, %s21, [#allocation4]
    $region5: #{tpu_custom_call.1} parent=1 // pred_fallthru
      _
    // Predicated region
    $region6: #{tpu_custom_call.1} parent=1 // pred_check
      _
    $region7: #{tpu_custom_call.1} parent=1 // pred_check_branch
      %25 = sbr.rel (0) target = $region9
    $region8: #{tpu_custom_call.1} parent=1 // pred_region
      %s27 = ssub.s32 256, 256
      %28 = vsyncadd [#allocation7], %s27
      %s29 = sshll.u32 [#allocation6], 4
      %s30 = int_to_ptr.vmem [resolvable:$true] %s29
      %35 = dma.hbm_to_vmem [thread:$0]  %s1, 256, %s30, [#allocation7], 64, 64, 4
    $region9: #{tpu_custom_call.1} parent=1 // pred_fallthru
      _
    // Predicated region
    $region10: #{tpu_custom_call.1} parent=1 // pred_check
      _
    $region11: #{tpu_custom_call.1} parent=1 // pred_check_branch
      %37 = sbr.rel (0) target = $region13
    $region12: #{tpu_custom_call.1} parent=1 // pred_region
      _
    $region13: #{tpu_custom_call.1} parent=1 // pred_fallthru
      _
    // Predicated region
    $region14: #{tpu_custom_call.1} parent=1 // pred_check
      _
    $region15: #{tpu_custom_call.1} parent=1 // pred_check_branch
      %39 = sbr.rel (0) target = $region17
    $region16: #{tpu_custom_call.1} parent=1 // pred_region
      %s41 = ssub.s32 256, 256
      %42 = vsyncadd [#allocation7], %s41
      %s43 = sshll.u32 [#allocation8], 4
      %s44 = int_to_ptr.vmem [resolvable:$true] %s43
      %49 = dma.hbm_to_vmem [thread:$0]  %s3, 256, %s44, [#allocation7], 64, 64, 4
    $region17: #{tpu_custom_call.1} parent=1 // pred_fallthru
      _
    // Predicated region
    $region18: #{tpu_custom_call.1} parent=1 // pred_check
      _
    $region19: #{tpu_custom_call.1} parent=1 // pred_check_branch
      %51 = sbr.rel (0) target = $region21
    $region20: #{tpu_custom_call.1} parent=1 // pred_region
      _
    $region21: #{tpu_custom_call.1} parent=1 // pred_fallthru
      _
    // Predicated region
    $region22: #{tpu_custom_call.1} parent=1 // pred_check
      _
    $region23: #{tpu_custom_call.1} parent=1 // pred_check_branch
      %53 = sbr.rel (0) target = $region25
    $region24: #{tpu_custom_call.1} parent=1 // pred_region
      %54 = dma.done [#allocation4], 64
    $region25: #{tpu_custom_call.1} parent=1 // pred_fallthru
      _
    // Predicated region
    $region26: #{tpu_custom_call.1} parent=1 // pred_check
      _
    $region27: #{tpu_custom_call.1} parent=1 // pred_check_branch
      %56 = sbr.rel (0) target = $region29
    $region28: #{tpu_custom_call.1} parent=1 // pred_region
      %57 = dma.done [#allocation7], 256
    $region29: #{tpu_custom_call.1} parent=1 // pred_fallthru
      _
    // Predicated region
    $region30: #{tpu_custom_call.1} parent=1 // pred_check
      _
    $region31: #{tpu_custom_call.1} parent=1 // pred_check_branch
      %59 = sbr.rel (0) target = $region33
    $region32: #{tpu_custom_call.1} parent=1 // pred_region
      %60 = dma.done [#allocation7], 256
    $region33: #{tpu_custom_call.1} parent=1 // pred_fallthru
      _
    %v62 = vld [vmem:[#allocation3] sm:$0xf]
    %v63 = vld [vmem:[#allocation6] sm:$0xf]
    %v64 = vld [vmem:[#allocation6 + $0x4] sm:$0xf]
    %v65 = vld [vmem:[#allocation6 + $0x8] sm:$0xf]
    %v66 = vld [vmem:[#allocation6 + $0xc] sm:$0xf]
    %v67 = vld [vmem:[%s2] sm:$0x1]
    %v69 = vlaneseq
    %v70 = vshrl.u32 %v69, 7
    %v71 = vsub.s32 0, %v70
    %v72 = vrot.slane %v67, %v71
    %v78 = vunpack.c.l.b16 %v63
    %v79 = vunpack.c.l.b16 %v64
    %v80 = vunpack.c.l.b16 %v65
    %v81 = vunpack.c.l.b16 %v66
    %v82 = vpack.c.b16 %v79, %v78
    %v83 = vpack.c.b16 %v81, %v80
    %vm86 = vcmask 261120
    %v88 = vsel %vm86, %v62, 0
    %90 = vmatprep.subr.bf16.mxu0 0
    %91 = vmatpush1.bf16.msra.mxu0 %v82
    %92 = vmatprep.subr.bf16.mxu0 0
    %93 = vmatpush1.bf16.msra.mxu0 %v83
    %94 = vmatprep.subr.bf16.mxu0 0
    %95 = vmatpush1.bf16.msra.mxu0 0
    %96 = vmatprep.subr.bf16.mxu0 0
    %97 = vmatpush1.bf16.msra.mxu0 0
    %98 = vmatprep.subr.bf16.mxu0 0
    %99 = vmatpush1.bf16.msra.mxu0 0
    %100 = vmatprep.subr.bf16.mxu0 0
    %101 = vmatpush1.bf16.msra.mxu0 0
    %102 = vmatprep.subr.bf16.mxu0 0
    %103 = vmatpush1.bf16.msra.mxu0 0
    %104 = vmatprep.subr.bf16.mxu0 0
    %105 = vmatpush1.bf16.msra.mxu0 0
    %106 = vmatprep.subr.bf16.mxu0 0
    %107 = vmatpush1.bf16.msra.mxu0 0
    %108 = vmatprep.subr.bf16.mxu0 0
    %109 = vmatpush1.bf16.msra.mxu0 0
    %110 = vmatprep.subr.bf16.mxu0 0
    %111 = vmatpush1.bf16.msra.mxu0 0
    %112 = vmatprep.subr.bf16.mxu0 0
    %113 = vmatpush1.bf16.msra.mxu0 0
    %114 = vmatprep.subr.bf16.mxu0 0
    %115 = vmatpush1.bf16.msra.mxu0 0
    %116 = vmatprep.subr.bf16.mxu0 0
    %117 = vmatpush1.bf16.msra.mxu0 0
    %118 = vmatprep.subr.bf16.mxu0 0
    %119 = vmatpush1.bf16.msra.mxu0 0
    %120 = vmatprep.subr.bf16.mxu0 0
    %121 = vmatpush1.bf16.msra.mxu0 0
    %122 = vmatprep.mubr.bf16.mxu0 0
    %123 = vmatmul.mubr.bf16.gmra.mrb[0].mxu0 %v88
    %v124 = vpop.f32.mrb[0].mxu0
    %v125 = vadd.f32 %v72, %v124
    %v126 = vpop.f32.mrb[0].mxu0
    %v127 = vpop.f32.mrb[0].mxu0
    %v128 = vpop.f32.mrb[0].mxu0
    %129 = vdwg.mxu0
    %v130 = vxor.u32 %v125, 2147483648
    %v131 = vmul.f32 %v130, 1.442695
    %v132 = vpow.pop %v131
    %v133 = vadd.f32 %v132, 1.0
    %v134 = vrcp.pop %v133
    %v135 = vmul.f32 1.0, %v134
    %v136 = vpack.c.bf16 %v135, %v135
    %v137 = vld [vmem:[#allocation8] sm:$0xf]
    %v138 = vld [vmem:[#allocation8 + $0x4] sm:$0xf]
    %v139 = vld [vmem:[#allocation8 + $0x8] sm:$0xf]
    %v140 = vld [vmem:[#allocation8 + $0xc] sm:$0xf]
    %s141 = sld [smem:[#allocation2]]
    %v142 = vstv %s141
    %v147 = vunpack.c.l.b16 %v137
    %v148 = vunpack.c.l.b16 %v138
    %v149 = vunpack.c.l.b16 %v139
    %v150 = vunpack.c.l.b16 %v140
    %v151 = vpack.c.b16 %v148, %v147
    %v152 = vpack.c.b16 %v150, %v149
    %v156 = vsel %vm86, %v136, 0
    %158 = vmatprep.subr.bf16.mxu0 0
    %159 = vmatpush1.bf16.msra.mxu0 %v151
    %160 = vmatprep.subr.bf16.mxu0 0
    %161 = vmatpush1.bf16.msra.mxu0 %v152
    %162 = vmatprep.subr.bf16.mxu0 0
    %163 = vmatpush1.bf16.msra.mxu0 0
    %164 = vmatprep.subr.bf16.mxu0 0
    %165 = vmatpush1.bf16.msra.mxu0 0
    %166 = vmatprep.subr.bf16.mxu0 0
    %167 = vmatpush1.bf16.msra.mxu0 0
    %168 = vmatprep.subr.bf16.mxu0 0
    %169 = vmatpush1.bf16.msra.mxu0 0
    %170 = vmatprep.subr.bf16.mxu0 0
    %171 = vmatpush1.bf16.msra.mxu0 0
    %172 = vmatprep.subr.bf16.mxu0 0
    %173 = vmatpush1.bf16.msra.mxu0 0
    %174 = vmatprep.subr.bf16.mxu0 0
    %175 = vmatpush1.bf16.msra.mxu0 0
    %176 = vmatprep.subr.bf16.mxu0 0
    %177 = vmatpush1.bf16.msra.mxu0 0
    %178 = vmatprep.subr.bf16.mxu0 0
    %179 = vmatpush1.bf16.msra.mxu0 0
    %180 = vmatprep.subr.bf16.mxu0 0
    %181 = vmatpush1.bf16.msra.mxu0 0
    %182 = vmatprep.subr.bf16.mxu0 0
    %183 = vmatpush1.bf16.msra.mxu0 0
    %184 = vmatprep.subr.bf16.mxu0 0
    %185 = vmatpush1.bf16.msra.mxu0 0
    %186 = vmatprep.subr.bf16.mxu0 0
    %187 = vmatpush1.bf16.msra.mxu0 0
    %188 = vmatprep.subr.bf16.mxu0 0
    %189 = vmatpush1.bf16.msra.mxu0 0
    %190 = vmatprep.mubr.bf16.mxu0 0
    %191 = vmatmul.mubr.bf16.gmra.mrb[0].mxu0 %v156
    %v192 = vpop.f32.mrb[0].mxu0
    %v193 = vadd.f32 %v142, %v192
    %v194 = vpop.f32.mrb[0].mxu0
    %v195 = vpop.f32.mrb[0].mxu0
    %v196 = vpop.f32.mrb[0].mxu0
    %197 = vdwg.mxu0
    %v198 = vxor.u32 %v193, 2147483648
    %v199 = vmul.f32 %v198, 1.442695
    %v200 = vpow.pop %v199
    %v201 = vadd.f32 %v200, 1.0
    %v202 = vrcp.pop %v201
    %v203 = vmul.f32 1.0, %v202
    %204 = vst [vmem:[#allocation9] sm:$0xff] %v203
    // Predicated region
    $region34: #{tpu_custom_call.1} parent=1 // pred_check
      _
    $region35: #{tpu_custom_call.1} parent=1 // pred_check_branch
      %206 = sbr.rel (0) target = $region37
    $region36: #{tpu_custom_call.1} parent=1 // pred_region
      %s208 = ssub.s32 128, 128
      %209 = vsyncadd [#allocation5], %s208
      %s211 = sshll.u32 [#allocation9], 4
      %s212 = int_to_ptr.vmem [resolvable:$true] %s211
      %214 = dma.vmem_to_hbm [thread:$0]  %s212, 128, %s5, [#allocation5]
    $region37: #{tpu_custom_call.1} parent=1 // pred_fallthru
      _
    // Predicated region
    $region38: #{tpu_custom_call.1} parent=1 // pred_check
      _
    $region39: #{tpu_custom_call.1} parent=1 // pred_check_branch
      %216 = sbr.rel (0) target = $region41
    $region40: #{tpu_custom_call.1} parent=1 // pred_region
      %217 = dma.done [#allocation5], 128
    $region41: #{tpu_custom_call.1} parent=1 // pred_fallthru
      _
    %218 = vsyncpa [#allocation4], 1
    %219 = vsyncpa [#allocation7], 1
    %220 = vsyncpa [#allocation5], 1

</llo_original>
